<compile_context>
chip_gen: v7x
topology: tpu7x:2x2x1
jax: 0.10.0
libtpu: 0.0.40
codegen_flags: <defaults>
</compile_context>

<pallas_src>
import functools

import jax
import jax.numpy as jnp
import numpy as np
from jax.experimental import pallas as pl
from jax.experimental.pallas import tpu as pltpu


def _round_up(x, m):
    return (x + m - 1) // m * m


def _cnn_text_kernel(max_ks, tn, w_pad, emb_ref, convw_ref, cbias_ref, mask_ref,
                     fcw_ref, fcb_ref, out_ref):
    """One batch tile: per-shift conv matmuls (+XLU rolls), bias+ReLU, masked
    max-pool over time, single packed FC."""
    tnw = emb_ref.shape[0]                  # TN * W_pad
    f_pad = convw_ref.shape[-1]

    emb2 = emb_ref[...]                                                   # (TNW, D) bf16
    # Shift 0 contributes in place; for s >= 1 the f32 partial (emb @ W_s) is rolled by
    # -s along time so that acc[t] += emb[t+s] @ W_s.  Positions that read across a
    # batch-row boundary land at t >= L_branch and are masked out below.
    acc = jnp.dot(emb2, convw_ref[0], preferred_element_type=jnp.float32)
    for s in range(1, max_ks):
        ps = jnp.dot(emb2, convw_ref[s], preferred_element_type=jnp.float32)
        acc = acc + pltpu.roll(ps, shift=tnw - s, axis=0)

    act = jnp.maximum(acc + cbias_ref[...], 0.0)                          # (TNW, F_pad)
    act = act.reshape(tn, w_pad, f_pad)                                   # layout-free
    # Mask (a) time positions >= L_branch and (b) zero-padded channel columns to 0;
    # ReLU output >= 0 so 0 is neutral for the max-pool.
    act = jnp.where(mask_ref[...] != 0.0, act, 0.0)
    pooled = jnp.max(act, axis=1)                                         # (TN, F_pad)

    logits = jnp.dot(pooled, fcw_ref[...], preferred_element_type=jnp.float32)
    out_ref[...] = (logits + fcb_ref[...]).astype(out_ref.dtype)


def cnn_text_forward(tokens, params, *, kernel_sizes, kernel_num, class_num):
    """tokens: (N, W) int32. params: PyTorch-shaped weights (see init_params)."""
    kernel_sizes = tuple(int(k) for k in kernel_sizes)
    max_ks = max(kernel_sizes)
    nb = len(kernel_sizes)
    K = kernel_num
    C = class_num

    N, W = tokens.shape
    if W < max_ks:
        raise ValueError(f"sequence length {W} must be >= max kernel size {max_ks}")

    embed_table = params["embed"]            # (V, D)
    D = embed_table.shape[1]

    W_pad = _round_up(W, 16)                 # bf16 sublane packing -> layout-free reshapes
    F = nb * K
    F_pad = _round_up(F, 128)                # lane-dense channel axis
    C_pad = _round_up(C, 128)                # lane-dense output store

    # ---- per-generation batch-tile sizing (lane-padding-aware VMEM estimate) ----
    def _lanes(n):
        return _round_up(n, 128)

    try:
        vmem_cap = int(pltpu.get_tpu_info().vmem_capacity_bytes)
    except Exception:
        vmem_cap = 64 * 1024 * 1024          # conservative (v7x per-TC) fallback
    budget = vmem_cap // 2                   # leave headroom for double-buffers / misc
    vmem_limit = min(vmem_cap * 3 // 4, 100 * 1024 * 1024)

    per_row = (2 * W_pad * _lanes(D) * 2     # double-buffered bf16 emb tile (lane-padded)
               + 3 * W_pad * F_pad * 4       # f32 acc + rolled partial + masked act
               + 2 * C_pad * 4)              # double-buffered output row
    fixed = (max_ks * _lanes(D) * F_pad * 2 + W_pad * F_pad * 4
             + F_pad * C_pad * 4 + (F_pad + C_pad) * 4)
    tn_cap = max(8, ((budget - fixed) // per_row) // 8 * 8)

    N8 = _round_up(N, 8)
    TN = min(tn_cap, N8)
    if TN >= N8 and N8 >= 16:
        TN = _round_up((N8 + 1) // 2, 8)     # guarantee >=2 grid steps (dual TC on v7x)
    N_pad = _round_up(N, TN)
    grid = (N_pad // TN,)

    # ---- inputs: pad the cheap int32 tokens, not the materialized activation ----
    tok = jnp.pad(tokens.astype(jnp.int32), ((0, N_pad - N), (0, W_pad - W)))
    emb = jnp.take(embed_table.astype(jnp.bfloat16), tok, axis=0)        # (N_pad, W_pad, D)
    emb = emb.reshape(N_pad * W_pad, D)                                  # free, row-major
    # Padded token rows/positions only ever reach masked (t >= L) outputs.

    # ---- per-shift packed conv weights / bias / validity mask / packed FC ----
    conv_w = jnp.zeros((max_ks, D, F_pad), jnp.float32)
    conv_b = jnp.zeros((1, F_pad), jnp.float32)
    mask = np.zeros((W_pad, F_pad), np.float32)
    for idx, ks in enumerate(kernel_sizes):
        w = jnp.transpose(params[f"conv{ks}_w"][:, 0, :, :], (1, 2, 0))  # (ks, D, K)
        for s in range(ks):
            conv_w = conv_w.at[s, :, idx * K:(idx + 1) * K].set(w[s])
        conv_b = conv_b.at[0, idx * K:(idx + 1) * K].set(params[f"conv{ks}_b"])
        mask[:W - ks + 1, idx * K:(idx + 1) * K] = 1.0
    conv_w = conv_w.astype(jnp.bfloat16)
    mask = jnp.asarray(mask)

    fc_w = jnp.zeros((F_pad, C_pad), jnp.float32).at[:F, :C].set(params["fc_w"].T)
    fc_b = jnp.zeros((1, C_pad), jnp.float32).at[0, :C].set(params["fc_b"])

    kernel = functools.partial(_cnn_text_kernel, max_ks, TN, W_pad)

    flops = 2 * N_pad * W_pad * D * F_pad * max_ks + 2 * N_pad * F_pad * C_pad
    bytes_accessed = (int(emb.size) * 2 + int(conv_w.size) * 2 + int(mask.size) * 4
                      + int(fc_w.size) * 4 + (F_pad + C_pad) * 4 + N_pad * C_pad * 4)

    out = pl.pallas_call(
        kernel,
        out_shape=jax.ShapeDtypeStruct((N_pad, C_pad), jnp.float32),
        grid=grid,
        in_specs=[
            pl.BlockSpec((TN * W_pad, D), lambda i: (i, 0)),          # emb: tiled over batch
            pl.BlockSpec((max_ks, D, F_pad), lambda i: (0, 0, 0)),    # per-shift conv weights
            pl.BlockSpec((1, F_pad), lambda i: (0, 0)),               # conv bias
            pl.BlockSpec((W_pad, F_pad), lambda i: (0, 0)),           # time/branch mask
            pl.BlockSpec((F_pad, C_pad), lambda i: (0, 0)),           # packed FC weight
            pl.BlockSpec((1, C_pad), lambda i: (0, 0)),               # FC bias
        ],
        out_specs=pl.BlockSpec((TN, C_pad), lambda i: (i, 0)),
        compiler_params=pltpu.CompilerParams(
            dimension_semantics=("parallel",),
            vmem_limit_bytes=vmem_limit,
        ),
        cost_estimate=pl.CostEstimate(flops=int(flops), transcendentals=0,
                                      bytes_accessed=int(bytes_accessed)),
    )(emb, conv_w, conv_b, mask, fc_w, fc_b)

    return out[:N, :C]


def cnn_text_reference(tokens, params, *, kernel_sizes, kernel_num, class_num):
    """Pure-JAX reference with the same bf16 inputs / f32 accumulation as the kernel."""
    emb = jnp.take(params["embed"].astype(jnp.bfloat16), tokens, axis=0)
    N, W, D = emb.shape
    feats = []
    for ks in kernel_sizes:
        w = jnp.transpose(params[f"conv{ks}_w"][:, 0, :, :], (1, 2, 0)).astype(jnp.bfloat16)
        L = W - ks + 1
        conv = jnp.zeros((N, L, kernel_num), jnp.float32)
        for s in range(ks):
            conv = conv + jnp.einsum("nld,dk->nlk", emb[:, s:s + L, :], w[s],
                                     preferred_element_type=jnp.float32)
        conv = jnp.maximum(conv + params[f"conv{ks}_b"][None, None, :], 0.0)
        feats.append(jnp.max(conv, axis=1))
    x = jnp.concatenate(feats, axis=1)
    return x @ params["fc_w"].T + params["fc_b"][None, :]


def init_params(key, *, embed_num, embed_dim, kernel_num, kernel_sizes, class_num):
    """Deterministic synthetic parameters in the original PyTorch shapes."""
    keys = jax.random.split(key, 1 + 2 * len(kernel_sizes) + 2)
    params = {"embed": 0.1 * jax.random.normal(keys[0], (embed_num, embed_dim),
                                               dtype=jnp.float32)}
    for i, ks in enumerate(kernel_sizes):
        params[f"conv{ks}_w"] = 0.1 * jax.random.normal(
            keys[1 + 2 * i], (kernel_num, 1, ks, embed_dim), dtype=jnp.float32)
        params[f"conv{ks}_b"] = 0.05 * jax.random.normal(
            keys[2 + 2 * i], (kernel_num,), dtype=jnp.float32)
    F_in = len(kernel_sizes) * kernel_num
    params["fc_w"] = 0.1 * jax.random.normal(keys[-2], (class_num, F_in), dtype=jnp.float32)
    params["fc_b"] = 0.05 * jax.random.normal(keys[-1], (class_num,), dtype=jnp.float32)
    return params


if __name__ == "__main__":
    embed_num = 100
    embed_dim = 32
    kernel_num = 8
    kernel_sizes = (3, 4, 5)
    class_num = 4
    N, W = 2, 16

    key = jax.random.PRNGKey(0)
    k_tok, k_par = jax.random.split(key)
    tokens = jax.random.randint(k_tok, (N, W), 0, embed_num, dtype=jnp.int32)
    params = init_params(k_par, embed_num=embed_num, embed_dim=embed_dim,
                         kernel_num=kernel_num, kernel_sizes=kernel_sizes,
                         class_num=class_num)

    logits = cnn_text_forward(tokens, params, kernel_sizes=kernel_sizes,
                              kernel_num=kernel_num, class_num=class_num)
    jax.block_until_ready(logits)
    assert logits.shape == (N, class_num)

    ref = cnn_text_reference(tokens, params, kernel_sizes=kernel_sizes,
                             kernel_num=kernel_num, class_num=class_num)
    max_err = float(jnp.max(jnp.abs(logits - ref)))
    assert max_err < 1e-2, f"mismatch vs reference: {max_err}"

    # TODO(synk): dropout is identity at inference; training-mode dropout not implemented.
    print("KERNEL_OK")
</pallas_src>

<mosaic_0001>
module attributes {stable_mosaic.version = 11 : i64} {
  func.func @_cnn_text_kernel(%arg0: i32, %arg1: memref<128x32xbf16, #tpu.memory_space<vmem>>, %arg2: memref<5x32x128xbf16, #tpu.memory_space<vmem>>, %arg3: memref<1x128xf32, #tpu.memory_space<vmem>>, %arg4: memref<16x128xf32, #tpu.memory_space<vmem>>, %arg5: memref<128x128xf32, #tpu.memory_space<vmem>>, %arg6: memref<1x128xf32, #tpu.memory_space<vmem>>, %arg7: memref<8x128xf32, #tpu.memory_space<vmem>>) attributes {dimension_semantics = [#tpu.dimension_semantics<parallel>], iteration_bounds = array<i64: 1>, scalar_prefetch = 0 : i64, scratch_operands = 0 : i64, tpu.core_type = #tpu.core_type<tc>, window_params = [{transform_indices = @transform_0, window_bounds = array<i64: 128, 32>}, {pipeline_mode = #tpu.pipeline_mode<synchronous>, transform_indices = @transform_1, window_bounds = array<i64: 5, 32, 128>}, {pipeline_mode = #tpu.pipeline_mode<synchronous>, transform_indices = @transform_2, window_bounds = array<i64: 1, 128>}, {pipeline_mode = #tpu.pipeline_mode<synchronous>, transform_indices = @transform_3, window_bounds = array<i64: 16, 128>}, {pipeline_mode = #tpu.pipeline_mode<synchronous>, transform_indices = @transform_4, window_bounds = array<i64: 128, 128>}, {pipeline_mode = #tpu.pipeline_mode<synchronous>, transform_indices = @transform_5, window_bounds = array<i64: 1, 128>}, {transform_indices = @transform_6, window_bounds = array<i64: 8, 128>}]} {
    %c0 = arith.constant 0 : index
    %c0_0 = arith.constant 0 : index
    %0 = vector.load %arg1[%c0, %c0_0] : memref<128x32xbf16, #tpu.memory_space<vmem>>, vector<128x32xbf16>
    %c0_1 = arith.constant 0 : index
    %c0_2 = arith.constant 0 : index
    %c0_3 = arith.constant 0 : index
    %1 = vector.load %arg2[%c0_1, %c0_2, %c0_3] : memref<5x32x128xbf16, #tpu.memory_space<vmem>>, vector<1x32x128xbf16>
    %2 = vector.shape_cast %1 : vector<1x32x128xbf16> to vector<32x128xbf16>
    %cst = arith.constant dense<0.000000e+00> : vector<128x128xf32>
    %3 = tpu.matmul %0, %2, %cst {dimension_numbers = #tpu.dot_dimension_numbers<[1], [0], [0], [1], [0, 0, 1, 1], [], []>} : vector<128x32xbf16>, vector<32x128xbf16>, vector<128x128xf32> -> vector<128x128xf32>
    %c1 = arith.constant 1 : index
    %c0_4 = arith.constant 0 : index
    %c0_5 = arith.constant 0 : index
    %4 = vector.load %arg2[%c1, %c0_4, %c0_5] : memref<5x32x128xbf16, #tpu.memory_space<vmem>>, vector<1x32x128xbf16>
    %5 = vector.shape_cast %4 : vector<1x32x128xbf16> to vector<32x128xbf16>
    %cst_6 = arith.constant dense<0.000000e+00> : vector<128x128xf32>
    %6 = tpu.matmul %0, %5, %cst_6 {dimension_numbers = #tpu.dot_dimension_numbers<[1], [0], [0], [1], [0, 0, 1, 1], [], []>} : vector<128x32xbf16>, vector<32x128xbf16>, vector<128x128xf32> -> vector<128x128xf32>
    %c127_i32 = arith.constant 127 : i32
    %7 = tpu.dynamic_rotate %6 by %c127_i32 dim 0 : vector<128x128xf32>, i32 -> vector<128x128xf32>
    %8 = arith.addf %3, %7 : vector<128x128xf32>
    %c2 = arith.constant 2 : index
    %c0_7 = arith.constant 0 : index
    %c0_8 = arith.constant 0 : index
    %9 = vector.load %arg2[%c2, %c0_7, %c0_8] : memref<5x32x128xbf16, #tpu.memory_space<vmem>>, vector<1x32x128xbf16>
    %10 = vector.shape_cast %9 : vector<1x32x128xbf16> to vector<32x128xbf16>
    %cst_9 = arith.constant dense<0.000000e+00> : vector<128x128xf32>
    %11 = tpu.matmul %0, %10, %cst_9 {dimension_numbers = #tpu.dot_dimension_numbers<[1], [0], [0], [1], [0, 0, 1, 1], [], []>} : vector<128x32xbf16>, vector<32x128xbf16>, vector<128x128xf32> -> vector<128x128xf32>
    %c126_i32 = arith.constant 126 : i32
    %12 = tpu.dynamic_rotate %11 by %c126_i32 dim 0 : vector<128x128xf32>, i32 -> vector<128x128xf32>
    %13 = arith.addf %8, %12 : vector<128x128xf32>
    %c3 = arith.constant 3 : index
    %c0_10 = arith.constant 0 : index
    %c0_11 = arith.constant 0 : index
    %14 = vector.load %arg2[%c3, %c0_10, %c0_11] : memref<5x32x128xbf16, #tpu.memory_space<vmem>>, vector<1x32x128xbf16>
    %15 = vector.shape_cast %14 : vector<1x32x128xbf16> to vector<32x128xbf16>
    %cst_12 = arith.constant dense<0.000000e+00> : vector<128x128xf32>
    %16 = tpu.matmul %0, %15, %cst_12 {dimension_numbers = #tpu.dot_dimension_numbers<[1], [0], [0], [1], [0, 0, 1, 1], [], []>} : vector<128x32xbf16>, vector<32x128xbf16>, vector<128x128xf32> -> vector<128x128xf32>
    %c125_i32 = arith.constant 125 : i32
    %17 = tpu.dynamic_rotate %16 by %c125_i32 dim 0 : vector<128x128xf32>, i32 -> vector<128x128xf32>
    %18 = arith.addf %13, %17 : vector<128x128xf32>
    %c4 = arith.constant 4 : index
    %c0_13 = arith.constant 0 : index
    %c0_14 = arith.constant 0 : index
    %19 = vector.load %arg2[%c4, %c0_13, %c0_14] : memref<5x32x128xbf16, #tpu.memory_space<vmem>>, vector<1x32x128xbf16>
    %20 = vector.shape_cast %19 : vector<1x32x128xbf16> to vector<32x128xbf16>
    %cst_15 = arith.constant dense<0.000000e+00> : vector<128x128xf32>
    %21 = tpu.matmul %0, %20, %cst_15 {dimension_numbers = #tpu.dot_dimension_numbers<[1], [0], [0], [1], [0, 0, 1, 1], [], []>} : vector<128x32xbf16>, vector<32x128xbf16>, vector<128x128xf32> -> vector<128x128xf32>
    %c124_i32 = arith.constant 124 : i32
    %22 = tpu.dynamic_rotate %21 by %c124_i32 dim 0 : vector<128x128xf32>, i32 -> vector<128x128xf32>
    %23 = arith.addf %18, %22 : vector<128x128xf32>
    %c0_16 = arith.constant 0 : index
    %c0_17 = arith.constant 0 : index
    %24 = vector.load %arg3[%c0_16, %c0_17] : memref<1x128xf32, #tpu.memory_space<vmem>>, vector<1x128xf32>
    %25 = vector.broadcast %24 : vector<1x128xf32> to vector<128x128xf32>
    %26 = arith.addf %23, %25 : vector<128x128xf32>
    %cst_18 = arith.constant 0.000000e+00 : f32
    %27 = vector.broadcast %cst_18 : f32 to vector<128x128xf32>
    %28 = arith.maximumf %26, %27 : vector<128x128xf32>
    %29 = vector.shape_cast %28 : vector<128x128xf32> to vector<8x16x128xf32>
    %c0_19 = arith.constant 0 : index
    %c0_20 = arith.constant 0 : index
    %30 = vector.load %arg4[%c0_19, %c0_20] : memref<16x128xf32, #tpu.memory_space<vmem>>, vector<16x128xf32>
    %cst_21 = arith.constant 0.000000e+00 : f32
    %31 = vector.broadcast %cst_21 : f32 to vector<16x128xf32>
    %32 = arith.cmpf one, %30, %31 : vector<16x128xf32>
    %cst_22 = arith.constant 0.000000e+00 : f32
    %33 = vector.shape_cast %32 : vector<16x128xi1> to vector<1x16x128xi1>
    %34 = vector.broadcast %33 : vector<1x16x128xi1> to vector<8x16x128xi1>
    %35 = vector.broadcast %cst_22 : f32 to vector<8x16x128xf32>
    %36 = arith.select %34, %29, %35 : vector<8x16x128xi1>, vector<8x16x128xf32>
    %cst_23 = arith.constant dense<0xFF800000> : vector<8x128xf32>
    %37 = vector.multi_reduction <maximumf>, %36, %cst_23 [1] : vector<8x16x128xf32> to vector<8x128xf32>
    %c0_24 = arith.constant 0 : index
    %c0_25 = arith.constant 0 : index
    %38 = vector.load %arg5[%c0_24, %c0_25] : memref<128x128xf32, #tpu.memory_space<vmem>>, vector<128x128xf32>
    %cst_26 = arith.constant dense<0.000000e+00> : vector<8x128xf32>
    %39 = tpu.matmul %37, %38, %cst_26 {dimension_numbers = #tpu.dot_dimension_numbers<[1], [0], [0], [1], [0, 0, 1, 1], [], []>} : vector<8x128xf32>, vector<128x128xf32>, vector<8x128xf32> -> vector<8x128xf32>
    %c0_27 = arith.constant 0 : index
    %c0_28 = arith.constant 0 : index
    %40 = vector.load %arg6[%c0_27, %c0_28] : memref<1x128xf32, #tpu.memory_space<vmem>>, vector<1x128xf32>
    %41 = vector.broadcast %40 : vector<1x128xf32> to vector<8x128xf32>
    %42 = arith.addf %39, %41 : vector<8x128xf32>
    %c0_29 = arith.constant 0 : index
    %c0_30 = arith.constant 0 : index
    %43 = vector.load %arg7[%c0_29, %c0_30] : memref<8x128xf32, #tpu.memory_space<vmem>>, vector<8x128xf32>
    tpu.vector_store %arg7[%c0_29, %c0_30], %42 {strides = array<i32>} : memref<8x128xf32, #tpu.memory_space<vmem>>, vector<8x128xf32>,
    return
  }
  func.func @transform_0(%arg0: i32) -> (i32, i32) {
    %c0_i32 = arith.constant 0 : i32
    %c0_i32_0 = arith.constant 0 : i32
    return %arg0, %c0_i32 : i32, i32
  }
  func.func @transform_1(%arg0: i32) -> (i32, i32, i32) {
    %c0_i32 = arith.constant 0 : i32
    %c0_i32_0 = arith.constant 0 : i32
    %c0_i32_1 = arith.constant 0 : i32
    %c0_i32_2 = arith.constant 0 : i32
    return %c0_i32, %c0_i32_0, %c0_i32_1 : i32, i32, i32
  }
  func.func @transform_2(%arg0: i32) -> (i32, i32) {
    %c0_i32 = arith.constant 0 : i32
    %c0_i32_0 = arith.constant 0 : i32
    %c0_i32_1 = arith.constant 0 : i32
    return %c0_i32, %c0_i32_0 : i32, i32
  }
  func.func @transform_3(%arg0: i32) -> (i32, i32) {
    %c0_i32 = arith.constant 0 : i32
    %c0_i32_0 = arith.constant 0 : i32
    %c0_i32_1 = arith.constant 0 : i32
    return %c0_i32, %c0_i32_0 : i32, i32
  }
  func.func @transform_4(%arg0: i32) -> (i32, i32) {
    %c0_i32 = arith.constant 0 : i32
    %c0_i32_0 = arith.constant 0 : i32
    %c0_i32_1 = arith.constant 0 : i32
    return %c0_i32, %c0_i32_0 : i32, i32
  }
  func.func @transform_5(%arg0: i32) -> (i32, i32) {
    %c0_i32 = arith.constant 0 : i32
    %c0_i32_0 = arith.constant 0 : i32
    %c0_i32_1 = arith.constant 0 : i32
    return %c0_i32, %c0_i32_0 : i32, i32
  }
  func.func @transform_6(%arg0: i32) -> (i32, i32) {
    %c0_i32 = arith.constant 0 : i32
    %c0_i32_0 = arith.constant 0 : i32
    return %arg0, %c0_i32 : i32, i32
  }
}

</mosaic_0001>

<llo_original>
// kernel: tpu_custom_call.1
$region0: #{tpu_custom_call.1}
  #allocation0 [shape = 'u32[]', space=smem, size = 0x4, offset = 0x4, fixed_abs, tag = 'smem constant byte address 0x4 - core index']
  #allocation1 [shape = 'u32[144,128]{1,0:T(1,128)}', space=vmem, size = 0x12000, scoped, tag = 'internal scratch']
  %s0 = inlined_call_operand.vmem [shape: bf16[128,32], index: 0, kind: input, shape index: {}]
  %s1 = inlined_call_operand.vmem [shape: bf16[5,32,128], index: 1, kind: input, shape index: {}]
  %s2 = inlined_call_operand.vmem [shape: f32[1,128], index: 2, kind: input, shape index: {}]
  %s3 = inlined_call_operand.hbm [shape: f32[16,128], index: 3, kind: input, shape index: {}]
  %s4 = inlined_call_operand.hbm [shape: f32[128,128], index: 4, kind: input, shape index: {}]
  %s5 = inlined_call_operand.vmem [shape: f32[1,128], index: 5, kind: input, shape index: {}]
  %s6 = inlined_call_operand.hbm [shape: f32[8,128], index: 6, kind: output, shape index: {}]
  %s7 = sld [smem:[#allocation0]]
  $region42: #{tpu_custom_call.1} parent=0
    _
  %s9 = ssub.s32 1, %s7
  %s10 = scalar_select 0, %s9, %s7
  $region1: #{tpu_custom_call.1} parent=0
    #allocation2 [shape = 'u8[8192]{0}', space=vmem, size = 0x2000, scoped, tag = 'input window, operand 3, single buffered']
    #allocation3 [shape = 's32[1]{0}', space=sflag, size = 0x4, scoped, tag = 'scoped memory for tpu_custom_call.1']
    #allocation4 [shape = 's32[1]{0}', space=sflag, size = 0x4, scoped, tag = 'scoped memory for tpu_custom_call.1']
    #allocation5 [shape = 'u8[65536]{0}', space=vmem, size = 0x10000, scoped, tag = 'input window, operand 4, single buffered']
    #allocation6 [shape = 's32[1]{0}', space=sflag, size = 0x4, scoped, tag = 'scoped memory for tpu_custom_call.1']
    #allocation7 [shape = 'u8[4096]{0}', space=vmem, size = 0x1000, scoped, tag = 'output window, operand 0, single buffered']
    %11 = vsyncpa [#allocation3], 0
    %12 = vsyncpa [#allocation6], 0
    %13 = vsyncpa [#allocation4], 0
    // Predicated region
    $region2: #{tpu_custom_call.1} parent=1 // pred_check
      _
    $region3: #{tpu_custom_call.1} parent=1 // pred_check_branch
      %15 = sbr.rel (0) target = $region5
    $region4: #{tpu_custom_call.1} parent=1 // pred_region
      _
    $region5: #{tpu_custom_call.1} parent=1 // pred_fallthru
      _
    // Predicated region
    $region6: #{tpu_custom_call.1} parent=1 // pred_check
      _
    $region7: #{tpu_custom_call.1} parent=1 // pred_check_branch
      %17 = sbr.rel (0) target = $region9
    $region8: #{tpu_custom_call.1} parent=1 // pred_region
      _
    $region9: #{tpu_custom_call.1} parent=1 // pred_fallthru
      _
    // Predicated region
    $region10: #{tpu_custom_call.1} parent=1 // pred_check
      _
    $region11: #{tpu_custom_call.1} parent=1 // pred_check_branch
      %19 = sbr.rel (0) target = $region13
    $region12: #{tpu_custom_call.1} parent=1 // pred_region
      _
    $region13: #{tpu_custom_call.1} parent=1 // pred_fallthru
      _
    // Predicated region
    $region14: #{tpu_custom_call.1} parent=1 // pred_check
      _
    $region15: #{tpu_custom_call.1} parent=1 // pred_check_branch
      %21 = sbr.rel (0) target = $region17
    $region16: #{tpu_custom_call.1} parent=1 // pred_region
      %s23 = ssub.s32 256, 256
      %24 = vsyncadd [#allocation3], %s23
      %s25 = sshll.u32 [#allocation2], 4
      %s26 = int_to_ptr.vmem [resolvable:$true] %s25
      %31 = dma.hbm_to_vmem [thread:$0]  %s3, 256, %s26, [#allocation3], 128, 128, 8
    $region17: #{tpu_custom_call.1} parent=1 // pred_fallthru
      _
    // Predicated region
    $region18: #{tpu_custom_call.1} parent=1 // pred_check
      _
    $region19: #{tpu_custom_call.1} parent=1 // pred_check_branch
      %33 = sbr.rel (0) target = $region21
    $region20: #{tpu_custom_call.1} parent=1 // pred_region
      %s35 = ssub.s32 2048, 2048
      %36 = vsyncadd [#allocation6], %s35
      %s37 = sshll.u32 [#allocation5], 4
      %s38 = int_to_ptr.vmem [resolvable:$true] %s37
      %43 = dma.hbm_to_vmem [thread:$0]  %s4, 2048, %s38, [#allocation6], 128, 128, 8
    $region21: #{tpu_custom_call.1} parent=1 // pred_fallthru
      _
    // Predicated region
    $region22: #{tpu_custom_call.1} parent=1 // pred_check
      _
    $region23: #{tpu_custom_call.1} parent=1 // pred_check_branch
      %45 = sbr.rel (0) target = $region25
    $region24: #{tpu_custom_call.1} parent=1 // pred_region
      _
    $region25: #{tpu_custom_call.1} parent=1 // pred_fallthru
      _
    // Predicated region
    $region26: #{tpu_custom_call.1} parent=1 // pred_check
      _
    $region27: #{tpu_custom_call.1} parent=1 // pred_check_branch
      %47 = sbr.rel (0) target = $region29
    $region28: #{tpu_custom_call.1} parent=1 // pred_region
      %48 = dma.done [#allocation3], 256
    $region29: #{tpu_custom_call.1} parent=1 // pred_fallthru
      _
    // Predicated region
    $region30: #{tpu_custom_call.1} parent=1 // pred_check
      _
    $region31: #{tpu_custom_call.1} parent=1 // pred_check_branch
      %50 = sbr.rel (0) target = $region33
    $region32: #{tpu_custom_call.1} parent=1 // pred_region
      %51 = dma.done [#allocation6], 2048
    $region33: #{tpu_custom_call.1} parent=1 // pred_fallthru
      _
    %v53 = vld [vmem:[%s0] sm:$0xf]
    %v54 = vld [vmem:[%s0 + $0x4] sm:$0xf]
    %v55 = vld [vmem:[%s0 + $0x8] sm:$0xf]
    %v56 = vld [vmem:[%s0 + $0xc] sm:$0xf]
    %v57 = vld [vmem:[%s0 + $0x10] sm:$0xf]
    %v58 = vld [vmem:[%s0 + $0x14] sm:$0xf]
    %v59 = vld [vmem:[%s0 + $0x18] sm:$0xf]
    %v60 = vld [vmem:[%s0 + $0x1c] sm:$0xf]
    %v61 = vld [vmem:[%s0 + $0x20] sm:$0xf]
    %v62 = vld [vmem:[%s0 + $0x24] sm:$0xf]
    %v63 = vld [vmem:[%s0 + $0x28] sm:$0xf]
    %v64 = vld [vmem:[%s0 + $0x2c] sm:$0xf]
    %v65 = vld [vmem:[%s0 + $0x30] sm:$0xf]
    %v66 = vld [vmem:[%s0 + $0x34] sm:$0xf]
    %v67 = vld [vmem:[%s0 + $0x38] sm:$0xf]
    %v68 = vld [vmem:[%s0 + $0x3c] sm:$0xf]
    %v69 = vld [vmem:[%s1] sm:$0xf]
    %v70 = vld [vmem:[%s1 + $0x4] sm:$0xf]
    %v71 = vld [vmem:[%s1 + $0x8] sm:$0xf]
    %v72 = vld [vmem:[%s1 + $0xc] sm:$0xf]
    %s73 = scalar_lea.vmem %s1, 16
    %v74 = vld [vmem:[%s73] sm:$0xf]
    %v75 = vld [vmem:[%s73 + $0x4] sm:$0xf]
    %v76 = vld [vmem:[%s73 + $0x8] sm:$0xf]
    %v77 = vld [vmem:[%s73 + $0xc] sm:$0xf]
    %v94 = vunpack.c.l.b16 %v53
    %v95 = vunpack.c.l.b16 %v54
    %v96 = vunpack.c.l.b16 %v55
    %v97 = vunpack.c.l.b16 %v56
    %v98 = vunpack.c.l.b16 %v57
    %v99 = vunpack.c.l.b16 %v58
    %v100 = vunpack.c.l.b16 %v59
    %v101 = vunpack.c.l.b16 %v60
    %v102 = vunpack.c.l.b16 %v61
    %v103 = vunpack.c.l.b16 %v62
    %v104 = vunpack.c.l.b16 %v63
    %v105 = vunpack.c.l.b16 %v64
    %v106 = vunpack.c.l.b16 %v65
    %v107 = vunpack.c.l.b16 %v66
    %v108 = vunpack.c.l.b16 %v67
    %v109 = vunpack.c.l.b16 %v68
    %v110 = vpack.c.b16 %v95, %v94
    %v111 = vpack.c.b16 %v97, %v96
    %v112 = vpack.c.b16 %v99, %v98
    %v113 = vpack.c.b16 %v101, %v100
    %v114 = vpack.c.b16 %v103, %v102
    %v115 = vpack.c.b16 %v105, %v104
    %v116 = vpack.c.b16 %v107, %v106
    %v117 = vpack.c.b16 %v109, %v108
    %v122 = vunpack.c.l.b16 %v74
    %v123 = vunpack.c.l.b16 %v75
    %v124 = vunpack.c.l.b16 %v76
    %v125 = vunpack.c.l.b16 %v77
    %v126 = vpack.c.b16 %v123, %v122
    %v127 = vpack.c.b16 %v125, %v124
    %vm130 = vcmask 261120
    %v132 = vsel %vm130, %v110, 0
    %v135 = vsel %vm130, %v111, 0
    %v138 = vsel %vm130, %v112, 0
    %v141 = vsel %vm130, %v113, 0
    %v144 = vsel %vm130, %v114, 0
    %v147 = vsel %vm130, %v115, 0
    %v150 = vsel %vm130, %v116, 0
    %v153 = vsel %vm130, %v117, 0
    %155 = vmatprep.subr.bf16.mxu0 0
    %156 = vmatpush1.bf16.msra.mxu0 %v126
    %157 = vmatprep.subr.bf16.mxu0 0
    %158 = vmatpush1.bf16.msra.mxu0 %v127
    %159 = vmatprep.subr.bf16.mxu0 0
    %160 = vmatpush1.bf16.msra.mxu0 0
    %161 = vmatprep.subr.bf16.mxu0 0
    %162 = vmatpush1.bf16.msra.mxu0 0
    %163 = vmatprep.subr.bf16.mxu0 0
    %164 = vmatpush1.bf16.msra.mxu0 0
    %165 = vmatprep.subr.bf16.mxu0 0
    %166 = vmatpush1.bf16.msra.mxu0 0
    %167 = vmatprep.subr.bf16.mxu0 0
    %168 = vmatpush1.bf16.msra.mxu0 0
    %169 = vmatprep.subr.bf16.mxu0 0
    %170 = vmatpush1.bf16.msra.mxu0 0
    %171 = vmatprep.subr.bf16.mxu0 0
    %172 = vmatpush1.bf16.msra.mxu0 0
    %173 = vmatprep.subr.bf16.mxu0 0
    %174 = vmatpush1.bf16.msra.mxu0 0
    %175 = vmatprep.subr.bf16.mxu0 0
    %176 = vmatpush1.bf16.msra.mxu0 0
    %177 = vmatprep.subr.bf16.mxu0 0
    %178 = vmatpush1.bf16.msra.mxu0 0
    %179 = vmatprep.subr.bf16.mxu0 0
    %180 = vmatpush1.bf16.msra.mxu0 0
    %181 = vmatprep.subr.bf16.mxu0 0
    %182 = vmatpush1.bf16.msra.mxu0 0
    %183 = vmatprep.subr.bf16.mxu0 0
    %184 = vmatpush1.bf16.msra.mxu0 0
    %185 = vmatprep.subr.bf16.mxu0 0
    %186 = vmatpush1.bf16.msra.mxu0 0
    %187 = vmatprep.mubr.bf16.mxu0 0
    %188 = vmatmul.mubr.bf16.gmra.mrb[0].mxu0 %v132
    %v189 = vpop.f32.mrb[0].mxu0
    %v190 = vadd.f32 0.0, %v189
    %v191 = vpop.f32.mrb[0].mxu0
    %v192 = vpop.f32.mrb[0].mxu0
    %v193 = vadd.f32 0.0, %v192
    %v194 = vpop.f32.mrb[0].mxu0
    %195 = vmatprep.mubr.bf16.mxu0 0
    %196 = vmatmul.mubr.bf16.gmra.mrb[0].mxu0 %v135
    %v197 = vpop.f32.mrb[0].mxu0
    %v198 = vadd.f32 0.0, %v197
    %v199 = vpop.f32.mrb[0].mxu0
    %v200 = vpop.f32.mrb[0].mxu0
    %v201 = vadd.f32 0.0, %v200
    %v202 = vpop.f32.mrb[0].mxu0
    %203 = vmatprep.mubr.bf16.mxu0 0
    %204 = vmatmul.mubr.bf16.gmra.mrb[0].mxu0 %v138
    %v205 = vpop.f32.mrb[0].mxu0
    %v206 = vadd.f32 0.0, %v205
    %v207 = vpop.f32.mrb[0].mxu0
    %v208 = vpop.f32.mrb[0].mxu0
    %v209 = vadd.f32 0.0, %v208
    %v210 = vpop.f32.mrb[0].mxu0
    %211 = vmatprep.mubr.bf16.mxu0 0
    %212 = vmatmul.mubr.bf16.gmra.mrb[0].mxu0 %v141
    %v213 = vpop.f32.mrb[0].mxu0
    %v214 = vadd.f32 0.0, %v213
    %v215 = vpop.f32.mrb[0].mxu0
    %v216 = vpop.f32.mrb[0].mxu0
    %v217 = vadd.f32 0.0, %v216
    %v218 = vpop.f32.mrb[0].mxu0
    %219 = vmatprep.mubr.bf16.mxu0 0
    %220 = vmatmul.mubr.bf16.gmra.mrb[0].mxu0 %v144
    %v221 = vpop.f32.mrb[0].mxu0
    %v222 = vadd.f32 0.0, %v221
    %v223 = vpop.f32.mrb[0].mxu0
    %v224 = vpop.f32.mrb[0].mxu0
    %v225 = vadd.f32 0.0, %v224
    %v226 = vpop.f32.mrb[0].mxu0
    %227 = vmatprep.mubr.bf16.mxu0 0
    %228 = vmatmul.mubr.bf16.gmra.mrb[0].mxu0 %v147
    %v229 = vpop.f32.mrb[0].mxu0
    %v230 = vadd.f32 0.0, %v229
    %v231 = vpop.f32.mrb[0].mxu0
    %v232 = vpop.f32.mrb[0].mxu0
    %v233 = vadd.f32 0.0, %v232
    %v234 = vpop.f32.mrb[0].mxu0
    %235 = vmatprep.mubr.bf16.mxu0 0
    %236 = vmatmul.mubr.bf16.gmra.mrb[0].mxu0 %v150
    %v237 = vpop.f32.mrb[0].mxu0
    %v238 = vadd.f32 0.0, %v237
    %v239 = vpop.f32.mrb[0].mxu0
    %v240 = vpop.f32.mrb[0].mxu0
    %v241 = vadd.f32 0.0, %v240
    %v242 = vpop.f32.mrb[0].mxu0
    %243 = vmatprep.mubr.bf16.mxu0 0
    %244 = vmatmul.mubr.bf16.gmra.mrb[0].mxu0 %v153
    %v245 = vpop.f32.mrb[0].mxu0
    %v246 = vadd.f32 0.0, %v245
    %v247 = vpop.f32.mrb[0].mxu0
    %v248 = vpop.f32.mrb[0].mxu0
    %v249 = vadd.f32 0.0, %v248
    %v250 = vpop.f32.mrb[0].mxu0
    %251 = vdwg.mxu0
    %v252 = vrot.slane %v190, 1
    %v253 = vrot.slane %v193, 1
    %v254 = vrot.slane %v198, 1
    %v255 = vrot.slane %v201, 1
    %v256 = vrot.slane %v206, 1
    %v257 = vrot.slane %v209, 1
    %v258 = vrot.slane %v214, 1
    %v259 = vrot.slane %v217, 1
    %v260 = vrot.slane %v222, 1
    %v261 = vrot.slane %v225, 1
    %v262 = vrot.slane %v230, 1
    %v263 = vrot.slane %v233, 1
    %v264 = vrot.slane %v238, 1
    %v265 = vrot.slane %v241, 1
    %v266 = vrot.slane %v246, 1
    %v267 = vrot.slane %v249, 1
    %v268 = vlaneseq
    %v269 = vshrl.u32 %v268, 7
    %vm270 = vcmp.lt.s32.totalorder %v269, 7
    %v271 = vsel %vm270, %v266, %v267
    %v272 = vsel %vm270, %v265, %v266
    %v273 = vsel %vm270, %v264, %v265
    %v274 = vsel %vm270, %v263, %v264
    %v275 = vsel %vm270, %v262, %v263
    %v276 = vsel %vm270, %v261, %v262
    %v277 = vsel %vm270, %v260, %v261
    %v278 = vsel %vm270, %v259, %v260
    %v279 = vsel %vm270, %v258, %v259
    %v280 = vsel %vm270, %v257, %v258
    %v281 = vsel %vm270, %v256, %v257
    %v282 = vsel %vm270, %v255, %v256
    %v283 = vsel %vm270, %v254, %v255
    %v284 = vsel %vm270, %v253, %v254
    %v285 = vsel %vm270, %v252, %v253
    %v286 = vsel %vm270, %v267, %v252
    %v291 = vunpack.c.l.b16 %v69
    %v292 = vunpack.c.l.b16 %v70
    %v293 = vunpack.c.l.b16 %v71
    %v294 = vunpack.c.l.b16 %v72
    %v295 = vpack.c.b16 %v292, %v291
    %v296 = vpack.c.b16 %v294, %v293
    %299 = vmatprep.subr.bf16.mxu0 0
    %300 = vmatpush1.bf16.msra.mxu0 %v295
    %301 = vmatprep.subr.bf16.mxu0 0
    %302 = vmatpush1.bf16.msra.mxu0 %v296
    %303 = vmatprep.subr.bf16.mxu0 0
    %304 = vmatpush1.bf16.msra.mxu0 0
    %305 = vmatprep.subr.bf16.mxu0 0
    %306 = vmatpush1.bf16.msra.mxu0 0
    %307 = vmatprep.subr.bf16.mxu0 0
    %308 = vmatpush1.bf16.msra.mxu0 0
    %309 = vmatprep.subr.bf16.mxu0 0
    %310 = vmatpush1.bf16.msra.mxu0 0
    %311 = vmatprep.subr.bf16.mxu0 0
    %312 = vmatpush1.bf16.msra.mxu0 0
    %313 = vmatprep.subr.bf16.mxu0 0
    %314 = vmatpush1.bf16.msra.mxu0 0
    %315 = vmatprep.subr.bf16.mxu0 0
    %316 = vmatpush1.bf16.msra.mxu0 0
    %317 = vmatprep.subr.bf16.mxu0 0
    %318 = vmatpush1.bf16.msra.mxu0 0
    %319 = vmatprep.subr.bf16.mxu0 0
    %320 = vmatpush1.bf16.msra.mxu0 0
    %321 = vmatprep.subr.bf16.mxu0 0
    %322 = vmatpush1.bf16.msra.mxu0 0
    %323 = vmatprep.subr.bf16.mxu0 0
    %324 = vmatpush1.bf16.msra.mxu0 0
    %325 = vmatprep.subr.bf16.mxu0 0
    %326 = vmatpush1.bf16.msra.mxu0 0
    %327 = vmatprep.subr.bf16.mxu0 0
    %328 = vmatpush1.bf16.msra.mxu0 0
    %329 = vmatprep.subr.bf16.mxu0 0
    %330 = vmatpush1.bf16.msra.mxu0 0
    %331 = vmatprep.mubr.bf16.mxu0 0
    %332 = vmatmul.mubr.bf16.gmra.mrb[0].mxu0 %v132
    %v333 = vpop.f32.mrb[0].mxu0
    %v334 = vadd.f32 %v285, %v333
    %v335 = vpop.f32.mrb[0].mxu0
    %v336 = vpop.f32.mrb[0].mxu0
    %v337 = vadd.f32 %v284, %v336
    %v338 = vpop.f32.mrb[0].mxu0
    %339 = vmatprep.mubr.bf16.mxu0 0
    %340 = vmatmul.mubr.bf16.gmra.mrb[0].mxu0 %v135
    %v341 = vpop.f32.mrb[0].mxu0
    %v342 = vadd.f32 %v283, %v341
    %v343 = vpop.f32.mrb[0].mxu0
    %v344 = vpop.f32.mrb[0].mxu0
    %v345 = vadd.f32 %v282, %v344
    %v346 = vpop.f32.mrb[0].mxu0
    %347 = vmatprep.mubr.bf16.mxu0 0
    %348 = vmatmul.mubr.bf16.gmra.mrb[0].mxu0 %v138
    %v349 = vpop.f32.mrb[0].mxu0
    %v350 = vadd.f32 %v281, %v349
    %v351 = vpop.f32.mrb[0].mxu0
    %v352 = vpop.f32.mrb[0].mxu0
    %v353 = vadd.f32 %v280, %v352
    %v354 = vpop.f32.mrb[0].mxu0
    %355 = vmatprep.mubr.bf16.mxu0 0
    %356 = vmatmul.mubr.bf16.gmra.mrb[0].mxu0 %v141
    %v357 = vpop.f32.mrb[0].mxu0
    %v358 = vadd.f32 %v279, %v357
    %v359 = vpop.f32.mrb[0].mxu0
    %v360 = vpop.f32.mrb[0].mxu0
    %v361 = vadd.f32 %v278, %v360
    %v362 = vpop.f32.mrb[0].mxu0
    %363 = vmatprep.mubr.bf16.mxu0 0
    %364 = vmatmul.mubr.bf16.gmra.mrb[0].mxu0 %v144
    %v365 = vpop.f32.mrb[0].mxu0
    %v366 = vadd.f32 %v277, %v365
    %v367 = vpop.f32.mrb[0].mxu0
    %v368 = vpop.f32.mrb[0].mxu0
    %v369 = vadd.f32 %v276, %v368
    %v370 = vpop.f32.mrb[0].mxu0
    %371 = vmatprep.mubr.bf16.mxu0 0
    %372 = vmatmul.mubr.bf16.gmra.mrb[0].mxu0 %v147
    %v373 = vpop.f32.mrb[0].mxu0
    %v374 = vadd.f32 %v275, %v373
    %v375 = vpop.f32.mrb[0].mxu0
    %v376 = vpop.f32.mrb[0].mxu0
    %v377 = vadd.f32 %v274, %v376
    %v378 = vpop.f32.mrb[0].mxu0
    %379 = vmatprep.mubr.bf16.mxu0 0
    %380 = vmatmul.mubr.bf16.gmra.mrb[0].mxu0 %v150
    %v381 = vpop.f32.mrb[0].mxu0
    %v382 = vadd.f32 %v273, %v381
    %v383 = vpop.f32.mrb[0].mxu0
    %v384 = vpop.f32.mrb[0].mxu0
    %v385 = vadd.f32 %v272, %v384
    %v386 = vpop.f32.mrb[0].mxu0
    %387 = vmatprep.mubr.bf16.mxu0 0
    %388 = vmatmul.mubr.bf16.gmra.mrb[0].mxu0 %v153
    %v389 = vpop.f32.mrb[0].mxu0
    %v390 = vadd.f32 %v271, %v389
    %v391 = vpop.f32.mrb[0].mxu0
    %v392 = vpop.f32.mrb[0].mxu0
    %v393 = vadd.f32 %v286, %v392
    %v394 = vpop.f32.mrb[0].mxu0
    %395 = vdwg.mxu0
    %s396 = scalar_lea.vmem %s1, 32
    %v397 = vld [vmem:[%s396] sm:$0xf]
    %v398 = vld [vmem:[%s396 + $0x4] sm:$0xf]
    %v399 = vld [vmem:[%s396 + $0x8] sm:$0xf]
    %v400 = vld [vmem:[%s396 + $0xc] sm:$0xf]
    %v405 = vunpack.c.l.b16 %v397
    %v406 = vunpack.c.l.b16 %v398
    %v407 = vunpack.c.l.b16 %v399
    %v408 = vunpack.c.l.b16 %v400
    %v409 = vpack.c.b16 %v406, %v405
    %v410 = vpack.c.b16 %v408, %v407
    %413 = vmatprep.subr.bf16.mxu0 0
    %414 = vmatpush1.bf16.msra.mxu0 %v409
    %415 = vmatprep.subr.bf16.mxu0 0
    %416 = vmatpush1.bf16.msra.mxu0 %v410
    %417 = vmatprep.subr.bf16.mxu0 0
    %418 = vmatpush1.bf16.msra.mxu0 0
    %419 = vmatprep.subr.bf16.mxu0 0
    %420 = vmatpush1.bf16.msra.mxu0 0
    %421 = vmatprep.subr.bf16.mxu0 0
    %422 = vmatpush1.bf16.msra.mxu0 0
    %423 = vmatprep.subr.bf16.mxu0 0
    %424 = vmatpush1.bf16.msra.mxu0 0
    %425 = vmatprep.subr.bf16.mxu0 0
    %426 = vmatpush1.bf16.msra.mxu0 0
    %427 = vmatprep.subr.bf16.mxu0 0
    %428 = vmatpush1.bf16.msra.mxu0 0
    %429 = vmatprep.subr.bf16.mxu0 0
    %430 = vmatpush1.bf16.msra.mxu0 0
    %431 = vmatprep.subr.bf16.mxu0 0
    %432 = vmatpush1.bf16.msra.mxu0 0
    %433 = vmatprep.subr.bf16.mxu0 0
    %434 = vmatpush1.bf16.msra.mxu0 0
    %435 = vmatprep.subr.bf16.mxu0 0
    %436 = vmatpush1.bf16.msra.mxu0 0
    %437 = vmatprep.subr.bf16.mxu0 0
    %438 = vmatpush1.bf16.msra.mxu0 0
    %439 = vmatprep.subr.bf16.mxu0 0
    %440 = vmatpush1.bf16.msra.mxu0 0
    %441 = vmatprep.subr.bf16.mxu0 0
    %442 = vmatpush1.bf16.msra.mxu0 0
    %443 = vmatprep.subr.bf16.mxu0 0
    %444 = vmatpush1.bf16.msra.mxu0 0
    %445 = vmatprep.mubr.bf16.mxu0 0
    %446 = vmatmul.mubr.bf16.gmra.mrb[0].mxu0 %v132
    %v447 = vpop.f32.mrb[0].mxu0
    %v448 = vadd.f32 0.0, %v447
    %v449 = vpop.f32.mrb[0].mxu0
    %v450 = vpop.f32.mrb[0].mxu0
    %v451 = vadd.f32 0.0, %v450
    %v452 = vpop.f32.mrb[0].mxu0
    %453 = vmatprep.mubr.bf16.mxu0 0
    %454 = vmatmul.mubr.bf16.gmra.mrb[0].mxu0 %v135
    %v455 = vpop.f32.mrb[0].mxu0
    %v456 = vadd.f32 0.0, %v455
    %v457 = vpop.f32.mrb[0].mxu0
    %v458 = vpop.f32.mrb[0].mxu0
    %v459 = vadd.f32 0.0, %v458
    %v460 = vpop.f32.mrb[0].mxu0
    %461 = vmatprep.mubr.bf16.mxu0 0
    %462 = vmatmul.mubr.bf16.gmra.mrb[0].mxu0 %v138
    %v463 = vpop.f32.mrb[0].mxu0
    %v464 = vadd.f32 0.0, %v463
    %v465 = vpop.f32.mrb[0].mxu0
    %v466 = vpop.f32.mrb[0].mxu0
    %v467 = vadd.f32 0.0, %v466
    %v468 = vpop.f32.mrb[0].mxu0
    %469 = vmatprep.mubr.bf16.mxu0 0
    %470 = vmatmul.mubr.bf16.gmra.mrb[0].mxu0 %v141
    %v471 = vpop.f32.mrb[0].mxu0
    %v472 = vadd.f32 0.0, %v471
    %v473 = vpop.f32.mrb[0].mxu0
    %v474 = vpop.f32.mrb[0].mxu0
    %v475 = vadd.f32 0.0, %v474
    %v476 = vpop.f32.mrb[0].mxu0
    %477 = vmatprep.mubr.bf16.mxu0 0
    %478 = vmatmul.mubr.bf16.gmra.mrb[0].mxu0 %v144
    %v479 = vpop.f32.mrb[0].mxu0
    %v480 = vadd.f32 0.0, %v479
    %v481 = vpop.f32.mrb[0].mxu0
    %v482 = vpop.f32.mrb[0].mxu0
    %v483 = vadd.f32 0.0, %v482
    %v484 = vpop.f32.mrb[0].mxu0
    %485 = vmatprep.mubr.bf16.mxu0 0
    %486 = vmatmul.mubr.bf16.gmra.mrb[0].mxu0 %v147
    %v487 = vpop.f32.mrb[0].mxu0
    %v488 = vadd.f32 0.0, %v487
    %v489 = vpop.f32.mrb[0].mxu0
    %v490 = vpop.f32.mrb[0].mxu0
    %v491 = vadd.f32 0.0, %v490
    %v492 = vpop.f32.mrb[0].mxu0
    %493 = vmatprep.mubr.bf16.mxu0 0
    %494 = vmatmul.mubr.bf16.gmra.mrb[0].mxu0 %v150
    %v495 = vpop.f32.mrb[0].mxu0
    %v496 = vadd.f32 0.0, %v495
    %v497 = vpop.f32.mrb[0].mxu0
    %v498 = vpop.f32.mrb[0].mxu0
    %v499 = vadd.f32 0.0, %v498
    %v500 = vpop.f32.mrb[0].mxu0
    %501 = vmatprep.mubr.bf16.mxu0 0
    %502 = vmatmul.mubr.bf16.gmra.mrb[0].mxu0 %v153
    %v503 = vpop.f32.mrb[0].mxu0
    %v504 = vadd.f32 0.0, %v503
    %v505 = vpop.f32.mrb[0].mxu0
    %v506 = vpop.f32.mrb[0].mxu0
    %v507 = vadd.f32 0.0, %v506
    %v508 = vpop.f32.mrb[0].mxu0
    %509 = vdwg.mxu0
    %v510 = vrot.slane %v448, 2
    %v511 = vrot.slane %v451, 2
    %v512 = vrot.slane %v456, 2
    %v513 = vrot.slane %v459, 2
    %v514 = vrot.slane %v464, 2
    %v515 = vrot.slane %v467, 2
    %v516 = vrot.slane %v472, 2
    %v517 = vrot.slane %v475, 2
    %v518 = vrot.slane %v480, 2
    %v519 = vrot.slane %v483, 2
    %v520 = vrot.slane %v488, 2
    %v521 = vrot.slane %v491, 2
    %v522 = vrot.slane %v496, 2
    %v523 = vrot.slane %v499, 2
    %v524 = vrot.slane %v504, 2
    %v525 = vrot.slane %v507, 2
    %vm526 = vcmp.lt.s32.totalorder %v269, 6
    %v527 = vsel %vm526, %v524, %v525
    %v528 = vsel %vm526, %v523, %v524
    %v529 = vsel %vm526, %v522, %v523
    %v530 = vsel %vm526, %v521, %v522
    %v531 = vsel %vm526, %v520, %v521
    %v532 = vsel %vm526, %v519, %v520
    %v533 = vsel %vm526, %v518, %v519
    %v534 = vsel %vm526, %v517, %v518
    %v535 = vsel %vm526, %v516, %v517
    %v536 = vsel %vm526, %v515, %v516
    %v537 = vsel %vm526, %v514, %v515
    %v538 = vsel %vm526, %v513, %v514
    %v539 = vsel %vm526, %v512, %v513
    %v540 = vsel %vm526, %v511, %v512
    %v541 = vsel %vm526, %v510, %v511
    %v542 = vsel %vm526, %v525, %v510
    %v543 = vadd.f32 %v334, %v541
    %v544 = vadd.f32 %v337, %v540
    %v545 = vadd.f32 %v342, %v539
    %v546 = vadd.f32 %v345, %v538
    %v547 = vadd.f32 %v350, %v537
    %v548 = vadd.f32 %v353, %v536
    %v549 = vadd.f32 %v358, %v535
    %v550 = vadd.f32 %v361, %v534
    %v551 = vadd.f32 %v366, %v533
    %v552 = vadd.f32 %v369, %v532
    %v553 = vadd.f32 %v374, %v531
    %v554 = vadd.f32 %v377, %v530
    %v555 = vadd.f32 %v382, %v529
    %v556 = vadd.f32 %v385, %v528
    %v557 = vadd.f32 %v390, %v527
    %v558 = vadd.f32 %v393, %v542
    %s559 = scalar_lea.vmem %s1, 48
    %v560 = vld [vmem:[%s559] sm:$0xf]
    %v561 = vld [vmem:[%s559 + $0x4] sm:$0xf]
    %v562 = vld [vmem:[%s559 + $0x8] sm:$0xf]
    %v563 = vld [vmem:[%s559 + $0xc] sm:$0xf]
    %v568 = vunpack.c.l.b16 %v560
    %v569 = vunpack.c.l.b16 %v561
    %v570 = vunpack.c.l.b16 %v562
    %v571 = vunpack.c.l.b16 %v563
    %v572 = vpack.c.b16 %v569, %v568
    %v573 = vpack.c.b16 %v571, %v570
    %576 = vmatprep.subr.bf16.mxu0 0
    %577 = vmatpush1.bf16.msra.mxu0 %v572
    %578 = vmatprep.subr.bf16.mxu0 0
    %579 = vmatpush1.bf16.msra.mxu0 %v573
    %580 = vmatprep.subr.bf16.mxu0 0
    %581 = vmatpush1.bf16.msra.mxu0 0
    %582 = vmatprep.subr.bf16.mxu0 0
    %583 = vmatpush1.bf16.msra.mxu0 0
    %584 = vmatprep.subr.bf16.mxu0 0
    %585 = vmatpush1.bf16.msra.mxu0 0
    %586 = vmatprep.subr.bf16.mxu0 0
    %587 = vmatpush1.bf16.msra.mxu0 0
    %588 = vmatprep.subr.bf16.mxu0 0
    %589 = vmatpush1.bf16.msra.mxu0 0
    %590 = vmatprep.subr.bf16.mxu0 0
    %591 = vmatpush1.bf16.msra.mxu0 0
    %592 = vmatprep.subr.bf16.mxu0 0
    %593 = vmatpush1.bf16.msra.mxu0 0
    %594 = vmatprep.subr.bf16.mxu0 0
    %595 = vmatpush1.bf16.msra.mxu0 0
    %596 = vmatprep.subr.bf16.mxu0 0
    %597 = vmatpush1.bf16.msra.mxu0 0
    %598 = vmatprep.subr.bf16.mxu0 0
    %599 = vmatpush1.bf16.msra.mxu0 0
    %600 = vmatprep.subr.bf16.mxu0 0
    %601 = vmatpush1.bf16.msra.mxu0 0
    %602 = vmatprep.subr.bf16.mxu0 0
    %603 = vmatpush1.bf16.msra.mxu0 0
    %604 = vmatprep.subr.bf16.mxu0 0
    %605 = vmatpush1.bf16.msra.mxu0 0
    %606 = vmatprep.subr.bf16.mxu0 0
    %607 = vmatpush1.bf16.msra.mxu0 0
    %608 = vmatprep.mubr.bf16.mxu0 0
    %609 = vmatmul.mubr.bf16.gmra.mrb[0].mxu0 %v132
    %v610 = vpop.f32.mrb[0].mxu0
    %v611 = vadd.f32 0.0, %v610
    %v612 = vpop.f32.mrb[0].mxu0
    %v613 = vpop.f32.mrb[0].mxu0
    %v614 = vadd.f32 0.0, %v613
    %v615 = vpop.f32.mrb[0].mxu0
    %616 = vmatprep.mubr.bf16.mxu0 0
    %617 = vmatmul.mubr.bf16.gmra.mrb[0].mxu0 %v135
    %v618 = vpop.f32.mrb[0].mxu0
    %v619 = vadd.f32 0.0, %v618
    %v620 = vpop.f32.mrb[0].mxu0
    %v621 = vpop.f32.mrb[0].mxu0
    %v622 = vadd.f32 0.0, %v621
    %v623 = vpop.f32.mrb[0].mxu0
    %624 = vmatprep.mubr.bf16.mxu0 0
    %625 = vmatmul.mubr.bf16.gmra.mrb[0].mxu0 %v138
    %v626 = vpop.f32.mrb[0].mxu0
    %v627 = vadd.f32 0.0, %v626
    %v628 = vpop.f32.mrb[0].mxu0
    %v629 = vpop.f32.mrb[0].mxu0
    %v630 = vadd.f32 0.0, %v629
    %v631 = vpop.f32.mrb[0].mxu0
    %632 = vmatprep.mubr.bf16.mxu0 0
    %633 = vmatmul.mubr.bf16.gmra.mrb[0].mxu0 %v141
    %v634 = vpop.f32.mrb[0].mxu0
    %v635 = vadd.f32 0.0, %v634
    %v636 = vpop.f32.mrb[0].mxu0
    %v637 = vpop.f32.mrb[0].mxu0
    %v638 = vadd.f32 0.0, %v637
    %v639 = vpop.f32.mrb[0].mxu0
    %640 = vmatprep.mubr.bf16.mxu0 0
    %641 = vmatmul.mubr.bf16.gmra.mrb[0].mxu0 %v144
    %v642 = vpop.f32.mrb[0].mxu0
    %v643 = vadd.f32 0.0, %v642
    %v644 = vpop.f32.mrb[0].mxu0
    %v645 = vpop.f32.mrb[0].mxu0
    %v646 = vadd.f32 0.0, %v645
    %v647 = vpop.f32.mrb[0].mxu0
    %648 = vmatprep.mubr.bf16.mxu0 0
    %649 = vmatmul.mubr.bf16.gmra.mrb[0].mxu0 %v147
    %v650 = vpop.f32.mrb[0].mxu0
    %v651 = vadd.f32 0.0, %v650
    %v652 = vpop.f32.mrb[0].mxu0
    %v653 = vpop.f32.mrb[0].mxu0
    %v654 = vadd.f32 0.0, %v653
    %v655 = vpop.f32.mrb[0].mxu0
    %656 = vmatprep.mubr.bf16.mxu0 0
    %657 = vmatmul.mubr.bf16.gmra.mrb[0].mxu0 %v150
    %v658 = vpop.f32.mrb[0].mxu0
    %v659 = vadd.f32 0.0, %v658
    %v660 = vpop.f32.mrb[0].mxu0
    %v661 = vpop.f32.mrb[0].mxu0
    %v662 = vadd.f32 0.0, %v661
    %v663 = vpop.f32.mrb[0].mxu0
    %664 = vmatprep.mubr.bf16.mxu0 0
    %665 = vmatmul.mubr.bf16.gmra.mrb[0].mxu0 %v153
    %v666 = vpop.f32.mrb[0].mxu0
    %v667 = vadd.f32 0.0, %v666
    %v668 = vpop.f32.mrb[0].mxu0
    %v669 = vpop.f32.mrb[0].mxu0
    %v670 = vadd.f32 0.0, %v669
    %v671 = vpop.f32.mrb[0].mxu0
    %672 = vdwg.mxu0
    %v673 = vrot.slane %v611, 3
    %v674 = vrot.slane %v614, 3
    %v675 = vrot.slane %v619, 3
    %v676 = vrot.slane %v622, 3
    %v677 = vrot.slane %v627, 3
    %v678 = vrot.slane %v630, 3
    %v679 = vrot.slane %v635, 3
    %v680 = vrot.slane %v638, 3
    %v681 = vrot.slane %v643, 3
    %v682 = vrot.slane %v646, 3
    %v683 = vrot.slane %v651, 3
    %v684 = vrot.slane %v654, 3
    %v685 = vrot.slane %v659, 3
    %v686 = vrot.slane %v662, 3
    %v687 = vrot.slane %v667, 3
    %v688 = vrot.slane %v670, 3
    %vm689 = vcmp.lt.s32.totalorder %v269, 5
    %v690 = vsel %vm689, %v687, %v688
    %v691 = vsel %vm689, %v686, %v687
    %v692 = vsel %vm689, %v685, %v686
    %v693 = vsel %vm689, %v684, %v685
    %v694 = vsel %vm689, %v683, %v684
    %v695 = vsel %vm689, %v682, %v683
    %v696 = vsel %vm689, %v681, %v682
    %v697 = vsel %vm689, %v680, %v681
    %v698 = vsel %vm689, %v679, %v680
    %v699 = vsel %vm689, %v678, %v679
    %v700 = vsel %vm689, %v677, %v678
    %v701 = vsel %vm689, %v676, %v677
    %v702 = vsel %vm689, %v675, %v676
    %v703 = vsel %vm689, %v674, %v675
    %v704 = vsel %vm689, %v673, %v674
    %v705 = vsel %vm689, %v688, %v673
    %v706 = vadd.f32 %v543, %v704
    %v707 = vadd.f32 %v544, %v703
    %v708 = vadd.f32 %v545, %v702
    %v709 = vadd.f32 %v546, %v701
    %v710 = vadd.f32 %v547, %v700
    %v711 = vadd.f32 %v548, %v699
    %v712 = vadd.f32 %v549, %v698
    %v713 = vadd.f32 %v550, %v697
    %v714 = vadd.f32 %v551, %v696
    %v715 = vadd.f32 %v552, %v695
    %v716 = vadd.f32 %v553, %v694
    %v717 = vadd.f32 %v554, %v693
    %v718 = vadd.f32 %v555, %v692
    %v719 = vadd.f32 %v556, %v691
    %v720 = vadd.f32 %v557, %v690
    %v721 = vadd.f32 %v558, %v705
    %s722 = scalar_lea.vmem %s1, 64
    %v723 = vld [vmem:[%s722] sm:$0xf]
    %v724 = vld [vmem:[%s722 + $0x4] sm:$0xf]
    %v725 = vld [vmem:[%s722 + $0x8] sm:$0xf]
    %v726 = vld [vmem:[%s722 + $0xc] sm:$0xf]
    %v731 = vunpack.c.l.b16 %v723
    %v732 = vunpack.c.l.b16 %v724
    %v733 = vunpack.c.l.b16 %v725
    %v734 = vunpack.c.l.b16 %v726
    %v735 = vpack.c.b16 %v732, %v731
    %v736 = vpack.c.b16 %v734, %v733
    %739 = vmatprep.subr.bf16.mxu0 0
    %740 = vmatpush1.bf16.msra.mxu0 %v735
    %741 = vmatprep.subr.bf16.mxu0 0
    %742 = vmatpush1.bf16.msra.mxu0 %v736
    %743 = vmatprep.subr.bf16.mxu0 0
    %744 = vmatpush1.bf16.msra.mxu0 0
    %745 = vmatprep.subr.bf16.mxu0 0
    %746 = vmatpush1.bf16.msra.mxu0 0
    %747 = vmatprep.subr.bf16.mxu0 0
    %748 = vmatpush1.bf16.msra.mxu0 0
    %749 = vmatprep.subr.bf16.mxu0 0
    %750 = vmatpush1.bf16.msra.mxu0 0
    %751 = vmatprep.subr.bf16.mxu0 0
    %752 = vmatpush1.bf16.msra.mxu0 0
    %753 = vmatprep.subr.bf16.mxu0 0
    %754 = vmatpush1.bf16.msra.mxu0 0
    %755 = vmatprep.subr.bf16.mxu0 0
    %756 = vmatpush1.bf16.msra.mxu0 0
    %757 = vmatprep.subr.bf16.mxu0 0
    %758 = vmatpush1.bf16.msra.mxu0 0
    %759 = vmatprep.subr.bf16.mxu0 0
    %760 = vmatpush1.bf16.msra.mxu0 0
    %761 = vmatprep.subr.bf16.mxu0 0
    %762 = vmatpush1.bf16.msra.mxu0 0
    %763 = vmatprep.subr.bf16.mxu0 0
    %764 = vmatpush1.bf16.msra.mxu0 0
    %765 = vmatprep.subr.bf16.mxu0 0
    %766 = vmatpush1.bf16.msra.mxu0 0
    %767 = vmatprep.subr.bf16.mxu0 0
    %768 = vmatpush1.bf16.msra.mxu0 0
    %769 = vmatprep.subr.bf16.mxu0 0
    %770 = vmatpush1.bf16.msra.mxu0 0
    %771 = vmatprep.mubr.bf16.mxu0 0
    %772 = vmatmul.mubr.bf16.gmra.mrb[0].mxu0 %v132
    %v773 = vpop.f32.mrb[0].mxu0
    %v774 = vadd.f32 0.0, %v773
    %v775 = vpop.f32.mrb[0].mxu0
    %v776 = vpop.f32.mrb[0].mxu0
    %v777 = vadd.f32 0.0, %v776
    %v778 = vpop.f32.mrb[0].mxu0
    %779 = vmatprep.mubr.bf16.mxu0 0
    %780 = vmatmul.mubr.bf16.gmra.mrb[0].mxu0 %v135
    %v781 = vpop.f32.mrb[0].mxu0
    %v782 = vadd.f32 0.0, %v781
    %v783 = vpop.f32.mrb[0].mxu0
    %v784 = vpop.f32.mrb[0].mxu0
    %v785 = vadd.f32 0.0, %v784
    %v786 = vpop.f32.mrb[0].mxu0
    %787 = vmatprep.mubr.bf16.mxu0 0
    %788 = vmatmul.mubr.bf16.gmra.mrb[0].mxu0 %v138
    %v789 = vpop.f32.mrb[0].mxu0
    %v790 = vadd.f32 0.0, %v789
    %v791 = vpop.f32.mrb[0].mxu0
    %v792 = vpop.f32.mrb[0].mxu0
    %v793 = vadd.f32 0.0, %v792
    %v794 = vpop.f32.mrb[0].mxu0
    %795 = vmatprep.mubr.bf16.mxu0 0
    %796 = vmatmul.mubr.bf16.gmra.mrb[0].mxu0 %v141
    %v797 = vpop.f32.mrb[0].mxu0
    %v798 = vadd.f32 0.0, %v797
    %v799 = vpop.f32.mrb[0].mxu0
    %v800 = vpop.f32.mrb[0].mxu0
    %v801 = vadd.f32 0.0, %v800
    %v802 = vpop.f32.mrb[0].mxu0
    %803 = vmatprep.mubr.bf16.mxu0 0
    %804 = vmatmul.mubr.bf16.gmra.mrb[0].mxu0 %v144
    %v805 = vpop.f32.mrb[0].mxu0
    %v806 = vadd.f32 0.0, %v805
    %v807 = vpop.f32.mrb[0].mxu0
    %v808 = vpop.f32.mrb[0].mxu0
    %v809 = vadd.f32 0.0, %v808
    %v810 = vpop.f32.mrb[0].mxu0
    %811 = vmatprep.mubr.bf16.mxu0 0
    %812 = vmatmul.mubr.bf16.gmra.mrb[0].mxu0 %v147
    %v813 = vpop.f32.mrb[0].mxu0
    %v814 = vadd.f32 0.0, %v813
    %v815 = vpop.f32.mrb[0].mxu0
    %v816 = vpop.f32.mrb[0].mxu0
    %v817 = vadd.f32 0.0, %v816
    %v818 = vpop.f32.mrb[0].mxu0
    %819 = vmatprep.mubr.bf16.mxu0 0
    %820 = vmatmul.mubr.bf16.gmra.mrb[0].mxu0 %v150
    %v821 = vpop.f32.mrb[0].mxu0
    %v822 = vadd.f32 0.0, %v821
    %v823 = vpop.f32.mrb[0].mxu0
    %v824 = vpop.f32.mrb[0].mxu0
    %v825 = vadd.f32 0.0, %v824
    %v826 = vpop.f32.mrb[0].mxu0
    %827 = vmatprep.mubr.bf16.mxu0 0
    %828 = vmatmul.mubr.bf16.gmra.mrb[0].mxu0 %v153
    %v829 = vpop.f32.mrb[0].mxu0
    %v830 = vadd.f32 0.0, %v829
    %v831 = vpop.f32.mrb[0].mxu0
    %v832 = vpop.f32.mrb[0].mxu0
    %v833 = vadd.f32 0.0, %v832
    %v834 = vpop.f32.mrb[0].mxu0
    %835 = vdwg.mxu0
    %v836 = vrot.slane %v774, 4
    %v837 = vrot.slane %v777, 4
    %v838 = vrot.slane %v782, 4
    %v839 = vrot.slane %v785, 4
    %v840 = vrot.slane %v790, 4
    %v841 = vrot.slane %v793, 4
    %v842 = vrot.slane %v798, 4
    %v843 = vrot.slane %v801, 4
    %v844 = vrot.slane %v806, 4
    %v845 = vrot.slane %v809, 4
    %v846 = vrot.slane %v814, 4
    %v847 = vrot.slane %v817, 4
    %v848 = vrot.slane %v822, 4
    %v849 = vrot.slane %v825, 4
    %v850 = vrot.slane %v830, 4
    %v851 = vrot.slane %v833, 4
    %vm852 = vcmp.lt.s32.totalorder %v269, 4
    %v853 = vsel %vm852, %v850, %v851
    %v854 = vsel %vm852, %v849, %v850
    %v855 = vsel %vm852, %v848, %v849
    %v856 = vsel %vm852, %v847, %v848
    %v857 = vsel %vm852, %v846, %v847
    %v858 = vsel %vm852, %v845, %v846
    %v859 = vsel %vm852, %v844, %v845
    %v860 = vsel %vm852, %v843, %v844
    %v861 = vsel %vm852, %v842, %v843
    %v862 = vsel %vm852, %v841, %v842
    %v863 = vsel %vm852, %v840, %v841
    %v864 = vsel %vm852, %v839, %v840
    %v865 = vsel %vm852, %v838, %v839
    %v866 = vsel %vm852, %v837, %v838
    %v867 = vsel %vm852, %v836, %v837
    %v868 = vsel %vm852, %v851, %v836
    %v869 = vadd.f32 %v706, %v867
    %v870 = vadd.f32 %v707, %v866
    %v871 = vadd.f32 %v708, %v865
    %v872 = vadd.f32 %v709, %v864
    %v873 = vadd.f32 %v710, %v863
    %v874 = vadd.f32 %v711, %v862
    %v875 = vadd.f32 %v712, %v861
    %v876 = vadd.f32 %v713, %v860
    %v877 = vadd.f32 %v714, %v859
    %v878 = vadd.f32 %v715, %v858
    %v879 = vadd.f32 %v716, %v857
    %v880 = vadd.f32 %v717, %v856
    %v881 = vadd.f32 %v718, %v855
    %v882 = vadd.f32 %v719, %v854
    %v883 = vadd.f32 %v720, %v853
    %v884 = vadd.f32 %v721, %v868
    %v885 = vld [vmem:[%s2] sm:$0x1]
    %v887 = vlaneseq
    %v888 = vshrl.u32 %v887, 7
    %v889 = vsub.s32 0, %v888
    %v890 = vrot.slane %v885, %v889
    %v892 = vadd.f32 %v869, %v890
    %v893 = vadd.f32 %v870, %v890
    %v894 = vadd.f32 %v871, %v890
    %v895 = vadd.f32 %v872, %v890
    %v896 = vadd.f32 %v873, %v890
    %v897 = vadd.f32 %v874, %v890
    %v898 = vadd.f32 %v875, %v890
    %v899 = vadd.f32 %v876, %v890
    %v900 = vadd.f32 %v877, %v890
    %v901 = vadd.f32 %v878, %v890
    %v902 = vadd.f32 %v879, %v890
    %v903 = vadd.f32 %v880, %v890
    %v904 = vadd.f32 %v881, %v890
    %v905 = vadd.f32 %v882, %v890
    %v906 = vadd.f32 %v883, %v890
    %v907 = vadd.f32 %v884, %v890
    %v908 = vmax.f32 %v892, 0.0
    %v909 = vmax.f32 %v893, 0.0
    %v910 = vmax.f32 %v894, 0.0
    %v911 = vmax.f32 %v895, 0.0
    %v912 = vmax.f32 %v896, 0.0
    %v913 = vmax.f32 %v897, 0.0
    %v914 = vmax.f32 %v898, 0.0
    %v915 = vmax.f32 %v899, 0.0
    %v916 = vmax.f32 %v900, 0.0
    %v917 = vmax.f32 %v901, 0.0
    %v918 = vmax.f32 %v902, 0.0
    %v919 = vmax.f32 %v903, 0.0
    %v920 = vmax.f32 %v904, 0.0
    %v921 = vmax.f32 %v905, 0.0
    %v922 = vmax.f32 %v906, 0.0
    %v923 = vmax.f32 %v907, 0.0
    %v924 = vld [vmem:[#allocation2] sm:$0xff]
    %v925 = vld [vmem:[#allocation2 + $0x8] sm:$0xff]
    %vm926 = vcmp.ne.f32.partialorder %v924, 0.0
    %vm927 = vcmp.ne.f32.partialorder %v925, 0.0
    %v928 = vsel %vm926, 1, 0
    %v929 = vsel %vm927, 1, 0
    %vm930 = vcmp.eq.s32.totalorder %v928, 1
    %vm931 = vcmp.eq.s32.totalorder %v929, 1
    %v932 = vsel %vm930, %v908, 0.0
    %v933 = vsel %vm931, %v909, 0.0
    %v934 = vsel %vm930, %v910, 0.0
    %v935 = vsel %vm931, %v911, 0.0
    %v936 = vsel %vm930, %v912, 0.0
    %v937 = vsel %vm931, %v913, 0.0
    %v938 = vsel %vm930, %v914, 0.0
    %v939 = vsel %vm931, %v915, 0.0
    %v940 = vsel %vm930, %v916, 0.0
    %v941 = vsel %vm931, %v917, 0.0
    %v942 = vsel %vm930, %v918, 0.0
    %v943 = vsel %vm931, %v919, 0.0
    %v944 = vsel %vm930, %v920, 0.0
    %v945 = vsel %vm931, %v921, 0.0
    %v946 = vsel %vm930, %v922, 0.0
    %v947 = vsel %vm931, %v923, 0.0
    %v948 = vmax.f32 %v932, %v933
    %v949 = vrot.slane %v948, 4
    %v950 = vmax.f32 %v948, %v949
    %v951 = vrot.slane %v950, 2
    %v952 = vmax.f32 %v950, %v951
    %v953 = vrot.slane %v952, 1
    %v954 = vmax.f32 %v952, %v953
    %v955 = vmax.f32 %v934, %v935
    %v956 = vrot.slane %v955, 4
    %v957 = vmax.f32 %v955, %v956
    %v958 = vrot.slane %v957, 2
    %v959 = vmax.f32 %v957, %v958
    %v960 = vrot.slane %v959, 1
    %v961 = vmax.f32 %v959, %v960
    %v962 = vmax.f32 %v936, %v937
    %v963 = vrot.slane %v962, 4
    %v964 = vmax.f32 %v962, %v963
    %v965 = vrot.slane %v964, 2
    %v966 = vmax.f32 %v964, %v965
    %v967 = vrot.slane %v966, 1
    %v968 = vmax.f32 %v966, %v967
    %v969 = vmax.f32 %v938, %v939
    %v970 = vrot.slane %v969, 4
    %v971 = vmax.f32 %v969, %v970
    %v972 = vrot.slane %v971, 2
    %v973 = vmax.f32 %v971, %v972
    %v974 = vrot.slane %v973, 1
    %v975 = vmax.f32 %v973, %v974
    %v976 = vmax.f32 %v940, %v941
    %v977 = vrot.slane %v976, 4
    %v978 = vmax.f32 %v976, %v977
    %v979 = vrot.slane %v978, 2
    %v980 = vmax.f32 %v978, %v979
    %v981 = vrot.slane %v980, 1
    %v982 = vmax.f32 %v980, %v981
    %v983 = vmax.f32 %v942, %v943
    %v984 = vrot.slane %v983, 4
    %v985 = vmax.f32 %v983, %v984
    %v986 = vrot.slane %v985, 2
    %v987 = vmax.f32 %v985, %v986
    %v988 = vrot.slane %v987, 1
    %v989 = vmax.f32 %v987, %v988
    %v990 = vmax.f32 %v944, %v945
    %v991 = vrot.slane %v990, 4
    %v992 = vmax.f32 %v990, %v991
    %v993 = vrot.slane %v992, 2
    %v994 = vmax.f32 %v992, %v993
    %v995 = vrot.slane %v994, 1
    %v996 = vmax.f32 %v994, %v995
    %v997 = vmax.f32 %v946, %v947
    %v998 = vrot.slane %v997, 4
    %v999 = vmax.f32 %v997, %v998
    %v1000 = vrot.slane %v999, 2
    %v1001 = vmax.f32 %v999, %v1000
    %v1002 = vrot.slane %v1001, 1
    %v1003 = vmax.f32 %v1001, %v1002
    %v1004 = vld [vmem:[#allocation5] sm:$0xff]
    %v1005 = vld [vmem:[#allocation5 + $0x8] sm:$0xff]
    %v1006 = vld [vmem:[#allocation5 + $0x10] sm:$0xff]
    %v1007 = vld [vmem:[#allocation5 + $0x18] sm:$0xff]
    %v1008 = vld [vmem:[#allocation5 + $0x20] sm:$0xff]
    %v1009 = vld [vmem:[#allocation5 + $0x28] sm:$0xff]
    %v1010 = vld [vmem:[#allocation5 + $0x30] sm:$0xff]
    %v1011 = vld [vmem:[#allocation5 + $0x38] sm:$0xff]
    %v1012 = vld [vmem:[#allocation5 + $0x40] sm:$0xff]
    %v1013 = vld [vmem:[#allocation5 + $0x48] sm:$0xff]
    %v1014 = vld [vmem:[#allocation5 + $0x50] sm:$0xff]
    %v1015 = vld [vmem:[#allocation5 + $0x58] sm:$0xff]
    %v1016 = vld [vmem:[#allocation5 + $0x60] sm:$0xff]
    %v1017 = vld [vmem:[#allocation5 + $0x68] sm:$0xff]
    %v1018 = vld [vmem:[#allocation5 + $0x70] sm:$0xff]
    %v1019 = vld [vmem:[#allocation5 + $0x78] sm:$0xff]
    %v1020 = vld [vmem:[%s5] sm:$0x1]
    %v1022 = vlaneseq
    %v1023 = vshrl.u32 %v1022, 7
    %v1024 = vsub.s32 0, %v1023
    %v1025 = vrot.slane %v1020, %v1024
    %vm1035 = vcmask 1041409
    %v1036 = vsel %vm1035, %v961, %v954
    %vm1037 = vcmask 1042434
    %v1038 = vsel %vm1037, %v968, %v1036
    %vm1039 = vcmask 1043459
    %v1040 = vsel %vm1039, %v975, %v1038
    %vm1041 = vcmask 1044484
    %v1042 = vsel %vm1041, %v982, %v1040
    %vm1043 = vcmask 1045509
    %v1044 = vsel %vm1043, %v989, %v1042
    %vm1045 = vcmask 1046534
    %v1046 = vsel %vm1045, %v996, %v1044
    %vm1047 = vcmask 1047559
    %v1048 = vsel %vm1047, %v1003, %v1046
    %1050 = vmatprep.subr.mxu0 0.0
    %1051 = vmatpush1.msra.mxu0 %v1004
    %1052 = vmatprep.subr.mxu0 0.0
    %1053 = vmatpush1.msra.mxu0 %v1005
    %1054 = vmatprep.subr.mxu0 0.0
    %1055 = vmatpush1.msra.mxu0 %v1006
    %1056 = vmatprep.subr.mxu0 0.0
    %1057 = vmatpush1.msra.mxu0 %v1007
    %1058 = vmatprep.subr.mxu0 0.0
    %1059 = vmatpush1.msra.mxu0 %v1008
    %1060 = vmatprep.subr.mxu0 0.0
    %1061 = vmatpush1.msra.mxu0 %v1009
    %1062 = vmatprep.subr.mxu0 0.0
    %1063 = vmatpush1.msra.mxu0 %v1010
    %1064 = vmatprep.subr.mxu0 0.0
    %1065 = vmatpush1.msra.mxu0 %v1011
    %1066 = vmatprep.subr.mxu0 0.0
    %1067 = vmatpush1.msra.mxu0 %v1012
    %1068 = vmatprep.subr.mxu0 0.0
    %1069 = vmatpush1.msra.mxu0 %v1013
    %1070 = vmatprep.subr.mxu0 0.0
    %1071 = vmatpush1.msra.mxu0 %v1014
    %1072 = vmatprep.subr.mxu0 0.0
    %1073 = vmatpush1.msra.mxu0 %v1015
    %1074 = vmatprep.subr.mxu0 0.0
    %1075 = vmatpush1.msra.mxu0 %v1016
    %1076 = vmatprep.subr.mxu0 0.0
    %1077 = vmatpush1.msra.mxu0 %v1017
    %1078 = vmatprep.subr.mxu0 0.0
    %1079 = vmatpush1.msra.mxu0 %v1018
    %1080 = vmatprep.subr.mxu0 0.0
    %1081 = vmatpush1.msra.mxu0 %v1019
    %1082 = vmatprep.subr.mxu0 0.0
    %1083 = vmatpush1.msra.mxu0 0.0
    %1084 = vmatprep.subr.mxu0 0.0
    %1085 = vmatpush1.msra.mxu0 0.0
    %1086 = vmatprep.subr.mxu0 0.0
    %1087 = vmatpush1.msra.mxu0 0.0
    %1088 = vmatprep.subr.mxu0 0.0
    %1089 = vmatpush1.msra.mxu0 0.0
    %1090 = vmatprep.subr.mxu0 0.0
    %1091 = vmatpush1.msra.mxu0 0.0
    %1092 = vmatprep.subr.mxu0 0.0
    %1093 = vmatpush1.msra.mxu0 0.0
    %1094 = vmatprep.subr.mxu0 0.0
    %1095 = vmatpush1.msra.mxu0 0.0
    %1096 = vmatprep.subr.mxu0 0.0
    %1097 = vmatpush1.msra.mxu0 0.0
    %1098 = vmatprep.subr.mxu0 0.0
    %1099 = vmatpush1.msra.mxu0 0.0
    %1100 = vmatprep.subr.mxu0 0.0
    %1101 = vmatpush1.msra.mxu0 0.0
    %1102 = vmatprep.subr.mxu0 0.0
    %1103 = vmatpush1.msra.mxu0 0.0
    %1104 = vmatprep.subr.mxu0 0.0
    %1105 = vmatpush1.msra.mxu0 0.0
    %1106 = vmatprep.subr.mxu0 0.0
    %1107 = vmatpush1.msra.mxu0 0.0
    %1108 = vmatprep.subr.mxu0 0.0
    %1109 = vmatpush1.msra.mxu0 0.0
    %1110 = vmatprep.subr.mxu0 0.0
    %1111 = vmatpush1.msra.mxu0 0.0
    %1112 = vmatprep.subr.mxu0 0.0
    %1113 = vmatpush1.msra.mxu0 0.0
    %1114 = vmatprep.mubr.f32.mxu0 0.0
    %1115 = vmatmul.mubr.f32.gmra.mrb[0].mxu0 %v1048
    %v1116 = vpop.f32.mrb[0].mxu0
    %v1117 = vadd.f32 %v1025, %v1116
    %v1118 = vpop.f32.mrb[0].mxu0
    %1119 = vdwg.mxu0
    %1120 = vst [vmem:[#allocation7] sm:$0xff] %v1117
    // Predicated region
    $region34: #{tpu_custom_call.1} parent=1 // pred_check
      _
    $region35: #{tpu_custom_call.1} parent=1 // pred_check_branch
      %1122 = sbr.rel (0) target = $region37
    $region36: #{tpu_custom_call.1} parent=1 // pred_region
      %s1124 = ssub.s32 128, 128
      %1125 = vsyncadd [#allocation4], %s1124
      %s1127 = sshll.u32 [#allocation7], 4
      %s1128 = int_to_ptr.vmem [resolvable:$true] %s1127
      %1130 = dma.vmem_to_hbm [thread:$0]  %s1128, 128, %s6, [#allocation4]
    $region37: #{tpu_custom_call.1} parent=1 // pred_fallthru
      _
    // Predicated region
    $region38: #{tpu_custom_call.1} parent=1 // pred_check
      _
    $region39: #{tpu_custom_call.1} parent=1 // pred_check_branch
      %1132 = sbr.rel (0) target = $region41
    $region40: #{tpu_custom_call.1} parent=1 // pred_region
      %1133 = dma.done [#allocation4], 128
    $region41: #{tpu_custom_call.1} parent=1 // pred_fallthru
      _
    %1134 = vsyncpa [#allocation3], 1
    %1135 = vsyncpa [#allocation6], 1
    %1136 = vsyncpa [#allocation4], 1

</llo_original>
